<compile_context>
chip_gen: v7x
topology: tpu7x:2x2x1
jax: 0.10.0
libtpu: 0.0.40
codegen_flags: <defaults>
</compile_context>

<pallas_src>
import functools

import jax
import jax.numpy as jnp
from jax.experimental import pallas as pl
from jax.experimental.pallas import tpu as pltpu


def get_same_padding(kernel_size, stride=1, dilation=1):
    # Same semantics as the reference helper (exact 'same' only for odd K, stride 1).
    return (dilation * (kernel_size - 1)) // 2


def _maskgen_fused_kernel(x_ref, w_ref, b_ref, m_ref, o_ref, pad_ref,
                          *, H, W, K, L):
    """All conv layers + final sigmoid for one batch element, activations in VMEM.

    x_ref  : (1, C, H*W)      input, channel-major, spatial flattened (lane-dense)
    w_ref  : (L, C, K*K*C)    per-layer weight matrices, rows ordered (kh, kw, ci)
    b_ref  : (L, C, 1)        per-layer biases
    m_ref  : (1, H*Wp)        1.0 where a "wide" column is a real output, else 0.0
    o_ref  : (1, C, H*Wp)     output in the wide layout (wrapper crops the width)
    pad_ref: (C, (Hp+1)*Wp)   zero-haloed padded activation, row-major flattened
    """
    C = x_ref.shape[1]
    pad = (K - 1) // 2
    Wp = W + 2 * pad
    HWp = H * Wp
    OFF = pad * Wp + pad            # flat index of padded-image element (pad, pad)

    # Halos (and the spare trailing row) must be zero for every layer.
    pad_ref[...] = jnp.zeros_like(pad_ref)
    mask = m_ref[...]               # hoisted; reused for every non-final layer

    # 'same' padding entirely in VMEM: copy each input row (width W) into the
    # interior of the padded buffer (row pitch Wp).  Done once per batch element.
    for y in range(H):
        pad_ref[:, OFF + y * Wp: OFF + y * Wp + W] = x_ref[0, :, y * W: y * W + W]

    for l in range(L):
        # One lane-dense patch matrix: each (kh, kw) tap is a contiguous static
        # slice of the flattened padded activation (shift = kh*Wp + kw).
        patches = jnp.concatenate(
            [pad_ref[:, kh * Wp + kw: kh * Wp + kw + HWp]
             for kh in range(K) for kw in range(K)],
            axis=0)                                            # (K*K*C, H*Wp)
        out_wide = jnp.dot(w_ref[l], patches,
                           preferred_element_type=jnp.float32) + b_ref[l]
        if l == L - 1:
            # Final layer: sigmoid (EUP, ~free) and one lane-dense store.
            o_ref[0] = jax.nn.sigmoid(out_wide).astype(o_ref.dtype)
        else:
            # Zero the wrap/halo columns and write the activation back into the
            # interior of the padded buffer for the next layer.
            pad_ref[:, OFF:OFF + HWp] = out_wide * mask


def maskgen_cnn_forward(x_nchw, weights, biases):
    """MaskGen_CNN forward: num_layers 'same' convs (NCHW / OIHW), then sigmoid."""
    N, C, H, W = x_nchw.shape
    L = len(weights)
    K = weights[0].shape[-1]
    assert K % 2 == 1, "module/kernel 'same' padding assumes odd kernel_size"
    for w, b in zip(weights, biases):
        assert w.shape == (C, C, K, K) and b.shape == (C,)

    pad = get_same_padding(K)
    Wp = W + 2 * pad
    Hp = H + 2 * pad
    HWp = H * Wp
    pad_len = (Hp + 1) * Wp          # +1 spare row keeps shifted slices in bounds
    kkc = K * K * C

    # Layout plumbing (tiny/free XLA ops, done once for the whole stack):
    #   weights (Cout, Cin, K, K) -> (Cout, K*K*Cin), rows ordered (kh, kw, ci)
    w_mat = jnp.stack(
        [jnp.transpose(w, (0, 2, 3, 1)).reshape(C, kkc) for w in weights])  # (L,C,KKC)
    b_mat = jnp.stack([b.reshape(C, 1) for b in biases])                    # (L,C,1)
    x_flat = x_nchw.reshape(N, C, H * W)            # NCHW is already channel-major
    #   a "wide" column j = y*Wp + x is a real output column iff x < W
    mask = (jnp.arange(HWp, dtype=jnp.int32) % Wp < W
            ).astype(jnp.float32).reshape(1, HWp)

    kern = functools.partial(_maskgen_fused_kernel, H=H, W=W, K=K, L=L)
    out_wide = pl.pallas_call(
        kern,
        out_shape=jax.ShapeDtypeStruct((N, C, HWp), jnp.float32),
        grid=(N,),
        in_specs=[
            pl.BlockSpec((1, C, H * W), lambda n: (n, 0, 0)),   # x
            pl.BlockSpec((L, C, kkc), lambda n: (0, 0, 0)),     # weights
            pl.BlockSpec((L, C, 1), lambda n: (0, 0, 0)),       # biases
            pl.BlockSpec((1, HWp), lambda n: (0, 0)),           # column mask
        ],
        out_specs=pl.BlockSpec((1, C, HWp), lambda n: (n, 0, 0)),
        scratch_shapes=[pltpu.VMEM((C, pad_len), jnp.float32)],
        compiler_params=pltpu.CompilerParams(
            dimension_semantics=("parallel",)),
    )(x_flat, w_mat, b_mat, mask)

    # Crop the wide (row pitch Wp) output back to width W: one tiny HBM-side op.
    return out_wide.reshape(N, C, H, Wp)[:, :, :, :W]


if __name__ == "__main__":
    # Module config: num_layers convs of in_channels -> out_channels; for the
    # nn.Sequential stack to type-check, in_channels == out_channels.
    num_layers = 2
    C = 4            # in_channels == out_channels
    K = 3            # kernel_size
    N, H, W = 2, 16, 16

    key = jax.random.PRNGKey(0)
    keys = jax.random.split(key, 1 + 2 * num_layers)
    x = jax.random.normal(keys[0], (N, C, H, W), jnp.float32)

    # Deterministic init (PyTorch Conv2d default: U(-1/sqrt(fan_in), 1/sqrt(fan_in))),
    # weights in PyTorch OIHW layout, biases (Cout,).
    bound = 1.0 / (C * K * K) ** 0.5
    weights, biases = [], []
    for i in range(num_layers):
        w = jax.random.uniform(keys[1 + 2 * i], (C, C, K, K), jnp.float32,
                               minval=-bound, maxval=bound)
        b = jax.random.uniform(keys[2 + 2 * i], (C,), jnp.float32,
                               minval=-bound, maxval=bound)
        weights.append(w)
        biases.append(b)

    out = maskgen_cnn_forward(x, weights, biases)
    out = jax.block_until_ready(out)

    # Pure-JAX reference (NCHW / OIHW, matching the PyTorch module).
    pad = get_same_padding(K)
    ref = x
    for i in range(num_layers):
        ref = jax.lax.conv_general_dilated(
            ref, weights[i], window_strides=(1, 1),
            padding=[(pad, pad), (pad, pad)],
            dimension_numbers=("NCHW", "OIHW", "NCHW"),
        ) + biases[i].reshape(1, C, 1, 1)
    ref = jax.nn.sigmoid(ref)

    assert out.shape == (N, C, H, W), out.shape
    err = float(jnp.abs(out - ref).max())
    assert jnp.allclose(out, ref, atol=1e-4, rtol=1e-4), err
    print("KERNEL_OK")
</pallas_src>

<mosaic_0001>
module attributes {stable_mosaic.version = 11 : i64} {
  func.func @_maskgen_fused_kernel(%arg0: i32, %arg1: memref<1x4x256xf32, #tpu.memory_space<vmem>>, %arg2: memref<2x4x36xf32, #tpu.memory_space<vmem>>, %arg3: memref<2x4x1xf32, #tpu.memory_space<vmem>>, %arg4: memref<1x288xf32, #tpu.memory_space<vmem>>, %arg5: memref<1x4x288xf32, #tpu.memory_space<vmem>>, %arg6: memref<4x342xf32, #tpu.memory_space<vmem>>) attributes {dimension_semantics = [#tpu.dimension_semantics<parallel>], iteration_bounds = array<i64: 2>, scalar_prefetch = 0 : i64, scratch_operands = 1 : i64, tpu.core_type = #tpu.core_type<tc>, window_params = [{transform_indices = @transform_0, window_bounds = array<i64: 1, 4, 256>}, {pipeline_mode = #tpu.pipeline_mode<synchronous>, transform_indices = @transform_1, window_bounds = array<i64: 2, 4, 36>}, {pipeline_mode = #tpu.pipeline_mode<synchronous>, transform_indices = @transform_2, window_bounds = array<i64: 2, 4, 1>}, {pipeline_mode = #tpu.pipeline_mode<synchronous>, transform_indices = @transform_3, window_bounds = array<i64: 1, 288>}, {transform_indices = @transform_4, window_bounds = array<i64: 1, 4, 288>}]} {
    %cst = arith.constant 0.000000e+00 : f32
    %0 = vector.broadcast %cst : f32 to vector<4x342xf32>
    %c0 = arith.constant 0 : index
    %c0_0 = arith.constant 0 : index
    %1 = vector.load %arg6[%c0, %c0_0] : memref<4x342xf32, #tpu.memory_space<vmem>>, vector<4x342xf32>
    tpu.vector_store %arg6[%c0, %c0_0], %0 {strides = array<i32>} : memref<4x342xf32, #tpu.memory_space<vmem>>, vector<4x342xf32>,
    %c0_1 = arith.constant 0 : index
    %c0_2 = arith.constant 0 : index
    %2 = vector.load %arg4[%c0_1, %c0_2] : memref<1x288xf32, #tpu.memory_space<vmem>>, vector<1x288xf32>
    %c0_3 = arith.constant 0 : index
    %c0_4 = arith.constant 0 : index
    %c0_5 = arith.constant 0 : index
    %3 = vector.load %arg1[%c0_3, %c0_4, %c0_5] : memref<1x4x256xf32, #tpu.memory_space<vmem>>, vector<1x4x16xf32>
    %4 = vector.shape_cast %3 : vector<1x4x16xf32> to vector<4x16xf32>
    %c0_6 = arith.constant 0 : index
    %c19 = arith.constant 19 : index
    %5 = vector.load %arg6[%c0_6, %c19] : memref<4x342xf32, #tpu.memory_space<vmem>>, vector<4x16xf32>
    tpu.vector_store %arg6[%c0_6, %c19], %4 {strides = array<i32>} : memref<4x342xf32, #tpu.memory_space<vmem>>, vector<4x16xf32>,
    %c0_7 = arith.constant 0 : index
    %c0_8 = arith.constant 0 : index
    %c16 = arith.constant 16 : index
    %6 = vector.load %arg1[%c0_7, %c0_8, %c16] : memref<1x4x256xf32, #tpu.memory_space<vmem>>, vector<1x4x16xf32>
    %7 = vector.shape_cast %6 : vector<1x4x16xf32> to vector<4x16xf32>
    %c0_9 = arith.constant 0 : index
    %c37 = arith.constant 37 : index
    %8 = vector.load %arg6[%c0_9, %c37] : memref<4x342xf32, #tpu.memory_space<vmem>>, vector<4x16xf32>
    tpu.vector_store %arg6[%c0_9, %c37], %7 {strides = array<i32>} : memref<4x342xf32, #tpu.memory_space<vmem>>, vector<4x16xf32>,
    %c0_10 = arith.constant 0 : index
    %c0_11 = arith.constant 0 : index
    %c32 = arith.constant 32 : index
    %9 = vector.load %arg1[%c0_10, %c0_11, %c32] : memref<1x4x256xf32, #tpu.memory_space<vmem>>, vector<1x4x16xf32>
    %10 = vector.shape_cast %9 : vector<1x4x16xf32> to vector<4x16xf32>
    %c0_12 = arith.constant 0 : index
    %c55 = arith.constant 55 : index
    %11 = vector.load %arg6[%c0_12, %c55] : memref<4x342xf32, #tpu.memory_space<vmem>>, vector<4x16xf32>
    tpu.vector_store %arg6[%c0_12, %c55], %10 {strides = array<i32>} : memref<4x342xf32, #tpu.memory_space<vmem>>, vector<4x16xf32>,
    %c0_13 = arith.constant 0 : index
    %c0_14 = arith.constant 0 : index
    %c48 = arith.constant 48 : index
    %12 = vector.load %arg1[%c0_13, %c0_14, %c48] : memref<1x4x256xf32, #tpu.memory_space<vmem>>, vector<1x4x16xf32>
    %13 = vector.shape_cast %12 : vector<1x4x16xf32> to vector<4x16xf32>
    %c0_15 = arith.constant 0 : index
    %c73 = arith.constant 73 : index
    %14 = vector.load %arg6[%c0_15, %c73] : memref<4x342xf32, #tpu.memory_space<vmem>>, vector<4x16xf32>
    tpu.vector_store %arg6[%c0_15, %c73], %13 {strides = array<i32>} : memref<4x342xf32, #tpu.memory_space<vmem>>, vector<4x16xf32>,
    %c0_16 = arith.constant 0 : index
    %c0_17 = arith.constant 0 : index
    %c64 = arith.constant 64 : index
    %15 = vector.load %arg1[%c0_16, %c0_17, %c64] : memref<1x4x256xf32, #tpu.memory_space<vmem>>, vector<1x4x16xf32>
    %16 = vector.shape_cast %15 : vector<1x4x16xf32> to vector<4x16xf32>
    %c0_18 = arith.constant 0 : index
    %c91 = arith.constant 91 : index
    %17 = vector.load %arg6[%c0_18, %c91] : memref<4x342xf32, #tpu.memory_space<vmem>>, vector<4x16xf32>
    tpu.vector_store %arg6[%c0_18, %c91], %16 {strides = array<i32>} : memref<4x342xf32, #tpu.memory_space<vmem>>, vector<4x16xf32>,
    %c0_19 = arith.constant 0 : index
    %c0_20 = arith.constant 0 : index
    %c80 = arith.constant 80 : index
    %18 = vector.load %arg1[%c0_19, %c0_20, %c80] : memref<1x4x256xf32, #tpu.memory_space<vmem>>, vector<1x4x16xf32>
    %19 = vector.shape_cast %18 : vector<1x4x16xf32> to vector<4x16xf32>
    %c0_21 = arith.constant 0 : index
    %c109 = arith.constant 109 : index
    %20 = vector.load %arg6[%c0_21, %c109] : memref<4x342xf32, #tpu.memory_space<vmem>>, vector<4x16xf32>
    tpu.vector_store %arg6[%c0_21, %c109], %19 {strides = array<i32>} : memref<4x342xf32, #tpu.memory_space<vmem>>, vector<4x16xf32>,
    %c0_22 = arith.constant 0 : index
    %c0_23 = arith.constant 0 : index
    %c96 = arith.constant 96 : index
    %21 = vector.load %arg1[%c0_22, %c0_23, %c96] : memref<1x4x256xf32, #tpu.memory_space<vmem>>, vector<1x4x16xf32>
    %22 = vector.shape_cast %21 : vector<1x4x16xf32> to vector<4x16xf32>
    %c0_24 = arith.constant 0 : index
    %c127 = arith.constant 127 : index
    %23 = vector.load %arg6[%c0_24, %c127] : memref<4x342xf32, #tpu.memory_space<vmem>>, vector<4x16xf32>
    tpu.vector_store %arg6[%c0_24, %c127], %22 {strides = array<i32>} : memref<4x342xf32, #tpu.memory_space<vmem>>, vector<4x16xf32>,
    %c0_25 = arith.constant 0 : index
    %c0_26 = arith.constant 0 : index
    %c112 = arith.constant 112 : index
    %24 = vector.load %arg1[%c0_25, %c0_26, %c112] : memref<1x4x256xf32, #tpu.memory_space<vmem>>, vector<1x4x16xf32>
    %25 = vector.shape_cast %24 : vector<1x4x16xf32> to vector<4x16xf32>
    %c0_27 = arith.constant 0 : index
    %c145 = arith.constant 145 : index
    %26 = vector.load %arg6[%c0_27, %c145] : memref<4x342xf32, #tpu.memory_space<vmem>>, vector<4x16xf32>
    tpu.vector_store %arg6[%c0_27, %c145], %25 {strides = array<i32>} : memref<4x342xf32, #tpu.memory_space<vmem>>, vector<4x16xf32>,
    %c0_28 = arith.constant 0 : index
    %c0_29 = arith.constant 0 : index
    %c128 = arith.constant 128 : index
    %27 = vector.load %arg1[%c0_28, %c0_29, %c128] : memref<1x4x256xf32, #tpu.memory_space<vmem>>, vector<1x4x16xf32>
    %28 = vector.shape_cast %27 : vector<1x4x16xf32> to vector<4x16xf32>
    %c0_30 = arith.constant 0 : index
    %c163 = arith.constant 163 : index
    %29 = vector.load %arg6[%c0_30, %c163] : memref<4x342xf32, #tpu.memory_space<vmem>>, vector<4x16xf32>
    tpu.vector_store %arg6[%c0_30, %c163], %28 {strides = array<i32>} : memref<4x342xf32, #tpu.memory_space<vmem>>, vector<4x16xf32>,
    %c0_31 = arith.constant 0 : index
    %c0_32 = arith.constant 0 : index
    %c144 = arith.constant 144 : index
    %30 = vector.load %arg1[%c0_31, %c0_32, %c144] : memref<1x4x256xf32, #tpu.memory_space<vmem>>, vector<1x4x16xf32>
    %31 = vector.shape_cast %30 : vector<1x4x16xf32> to vector<4x16xf32>
    %c0_33 = arith.constant 0 : index
    %c181 = arith.constant 181 : index
    %32 = vector.load %arg6[%c0_33, %c181] : memref<4x342xf32, #tpu.memory_space<vmem>>, vector<4x16xf32>
    tpu.vector_store %arg6[%c0_33, %c181], %31 {strides = array<i32>} : memref<4x342xf32, #tpu.memory_space<vmem>>, vector<4x16xf32>,
    %c0_34 = arith.constant 0 : index
    %c0_35 = arith.constant 0 : index
    %c160 = arith.constant 160 : index
    %33 = vector.load %arg1[%c0_34, %c0_35, %c160] : memref<1x4x256xf32, #tpu.memory_space<vmem>>, vector<1x4x16xf32>
    %34 = vector.shape_cast %33 : vector<1x4x16xf32> to vector<4x16xf32>
    %c0_36 = arith.constant 0 : index
    %c199 = arith.constant 199 : index
    %35 = vector.load %arg6[%c0_36, %c199] : memref<4x342xf32, #tpu.memory_space<vmem>>, vector<4x16xf32>
    tpu.vector_store %arg6[%c0_36, %c199], %34 {strides = array<i32>} : memref<4x342xf32, #tpu.memory_space<vmem>>, vector<4x16xf32>,
    %c0_37 = arith.constant 0 : index
    %c0_38 = arith.constant 0 : index
    %c176 = arith.constant 176 : index
    %36 = vector.load %arg1[%c0_37, %c0_38, %c176] : memref<1x4x256xf32, #tpu.memory_space<vmem>>, vector<1x4x16xf32>
    %37 = vector.shape_cast %36 : vector<1x4x16xf32> to vector<4x16xf32>
    %c0_39 = arith.constant 0 : index
    %c217 = arith.constant 217 : index
    %38 = vector.load %arg6[%c0_39, %c217] : memref<4x342xf32, #tpu.memory_space<vmem>>, vector<4x16xf32>
    tpu.vector_store %arg6[%c0_39, %c217], %37 {strides = array<i32>} : memref<4x342xf32, #tpu.memory_space<vmem>>, vector<4x16xf32>,
    %c0_40 = arith.constant 0 : index
    %c0_41 = arith.constant 0 : index
    %c192 = arith.constant 192 : index
    %39 = vector.load %arg1[%c0_40, %c0_41, %c192] : memref<1x4x256xf32, #tpu.memory_space<vmem>>, vector<1x4x16xf32>
    %40 = vector.shape_cast %39 : vector<1x4x16xf32> to vector<4x16xf32>
    %c0_42 = arith.constant 0 : index
    %c235 = arith.constant 235 : index
    %41 = vector.load %arg6[%c0_42, %c235] : memref<4x342xf32, #tpu.memory_space<vmem>>, vector<4x16xf32>
    tpu.vector_store %arg6[%c0_42, %c235], %40 {strides = array<i32>} : memref<4x342xf32, #tpu.memory_space<vmem>>, vector<4x16xf32>,
    %c0_43 = arith.constant 0 : index
    %c0_44 = arith.constant 0 : index
    %c208 = arith.constant 208 : index
    %42 = vector.load %arg1[%c0_43, %c0_44, %c208] : memref<1x4x256xf32, #tpu.memory_space<vmem>>, vector<1x4x16xf32>
    %43 = vector.shape_cast %42 : vector<1x4x16xf32> to vector<4x16xf32>
    %c0_45 = arith.constant 0 : index
    %c253 = arith.constant 253 : index
    %44 = vector.load %arg6[%c0_45, %c253] : memref<4x342xf32, #tpu.memory_space<vmem>>, vector<4x16xf32>
    tpu.vector_store %arg6[%c0_45, %c253], %43 {strides = array<i32>} : memref<4x342xf32, #tpu.memory_space<vmem>>, vector<4x16xf32>,
    %c0_46 = arith.constant 0 : index
    %c0_47 = arith.constant 0 : index
    %c224 = arith.constant 224 : index
    %45 = vector.load %arg1[%c0_46, %c0_47, %c224] : memref<1x4x256xf32, #tpu.memory_space<vmem>>, vector<1x4x16xf32>
    %46 = vector.shape_cast %45 : vector<1x4x16xf32> to vector<4x16xf32>
    %c0_48 = arith.constant 0 : index
    %c271 = arith.constant 271 : index
    %47 = vector.load %arg6[%c0_48, %c271] : memref<4x342xf32, #tpu.memory_space<vmem>>, vector<4x16xf32>
    tpu.vector_store %arg6[%c0_48, %c271], %46 {strides = array<i32>} : memref<4x342xf32, #tpu.memory_space<vmem>>, vector<4x16xf32>,
    %c0_49 = arith.constant 0 : index
    %c0_50 = arith.constant 0 : index
    %c240 = arith.constant 240 : index
    %48 = vector.load %arg1[%c0_49, %c0_50, %c240] : memref<1x4x256xf32, #tpu.memory_space<vmem>>, vector<1x4x16xf32>
    %49 = vector.shape_cast %48 : vector<1x4x16xf32> to vector<4x16xf32>
    %c0_51 = arith.constant 0 : index
    %c289 = arith.constant 289 : index
    %50 = vector.load %arg6[%c0_51, %c289] : memref<4x342xf32, #tpu.memory_space<vmem>>, vector<4x16xf32>
    tpu.vector_store %arg6[%c0_51, %c289], %49 {strides = array<i32>} : memref<4x342xf32, #tpu.memory_space<vmem>>, vector<4x16xf32>,
    %c0_52 = arith.constant 0 : index
    %c0_53 = arith.constant 0 : index
    %51 = vector.load %arg6[%c0_52, %c0_53] : memref<4x342xf32, #tpu.memory_space<vmem>>, vector<4x288xf32>
    %c0_54 = arith.constant 0 : index
    %c1 = arith.constant 1 : index
    %52 = vector.load %arg6[%c0_54, %c1] : memref<4x342xf32, #tpu.memory_space<vmem>>, vector<4x288xf32>
    %c0_55 = arith.constant 0 : index
    %c2 = arith.constant 2 : index
    %53 = vector.load %arg6[%c0_55, %c2] : memref<4x342xf32, #tpu.memory_space<vmem>>, vector<4x288xf32>
    %c0_56 = arith.constant 0 : index
    %c18 = arith.constant 18 : index
    %54 = vector.load %arg6[%c0_56, %c18] : memref<4x342xf32, #tpu.memory_space<vmem>>, vector<4x288xf32>
    %c0_57 = arith.constant 0 : index
    %c19_58 = arith.constant 19 : index
    %55 = vector.load %arg6[%c0_57, %c19_58] : memref<4x342xf32, #tpu.memory_space<vmem>>, vector<4x288xf32>
    %c0_59 = arith.constant 0 : index
    %c20 = arith.constant 20 : index
    %56 = vector.load %arg6[%c0_59, %c20] : memref<4x342xf32, #tpu.memory_space<vmem>>, vector<4x288xf32>
    %c0_60 = arith.constant 0 : index
    %c36 = arith.constant 36 : index
    %57 = vector.load %arg6[%c0_60, %c36] : memref<4x342xf32, #tpu.memory_space<vmem>>, vector<4x288xf32>
    %c0_61 = arith.constant 0 : index
    %c37_62 = arith.constant 37 : index
    %58 = vector.load %arg6[%c0_61, %c37_62] : memref<4x342xf32, #tpu.memory_space<vmem>>, vector<4x288xf32>
    %c0_63 = arith.constant 0 : index
    %c38 = arith.constant 38 : index
    %59 = vector.load %arg6[%c0_63, %c38] : memref<4x342xf32, #tpu.memory_space<vmem>>, vector<4x288xf32>
    %60 = tpu.concatenate %51, %52, %53, %54, %55, %56, %57, %58, %59 in 0 : vector<4x288xf32>, vector<4x288xf32>, vector<4x288xf32>, vector<4x288xf32>, vector<4x288xf32>, vector<4x288xf32>, vector<4x288xf32>, vector<4x288xf32>, vector<4x288xf32> -> vector<36x288xf32>
    %c0_64 = arith.constant 0 : index
    %c0_65 = arith.constant 0 : index
    %c0_66 = arith.constant 0 : index
    %61 = vector.load %arg2[%c0_64, %c0_65, %c0_66] : memref<2x4x36xf32, #tpu.memory_space<vmem>>, vector<1x4x36xf32>
    %62 = vector.shape_cast %61 : vector<1x4x36xf32> to vector<4x36xf32>
    %cst_67 = arith.constant dense<0.000000e+00> : vector<4x288xf32>
    %63 = tpu.matmul %62, %60, %cst_67 {dimension_numbers = #tpu.dot_dimension_numbers<[1], [0], [0], [1], [0, 0, 1, 1], [], []>} : vector<4x36xf32>, vector<36x288xf32>, vector<4x288xf32> -> vector<4x288xf32>
    %c0_68 = arith.constant 0 : index
    %c0_69 = arith.constant 0 : index
    %c0_70 = arith.constant 0 : index
    %64 = vector.load %arg3[%c0_68, %c0_69, %c0_70] : memref<2x4x1xf32, #tpu.memory_space<vmem>>, vector<1x4x1xf32>
    %65 = vector.shape_cast %64 : vector<1x4x1xf32> to vector<4x1xf32>
    %66 = vector.broadcast %65 : vector<4x1xf32> to vector<4x288xf32>
    %67 = arith.addf %63, %66 : vector<4x288xf32>
    %68 = vector.broadcast %2 : vector<1x288xf32> to vector<4x288xf32>
    %69 = arith.mulf %67, %68 : vector<4x288xf32>
    %c0_71 = arith.constant 0 : index
    %c19_72 = arith.constant 19 : index
    %70 = vector.load %arg6[%c0_71, %c19_72] : memref<4x342xf32, #tpu.memory_space<vmem>>, vector<4x288xf32>
    tpu.vector_store %arg6[%c0_71, %c19_72], %69 {strides = array<i32>} : memref<4x342xf32, #tpu.memory_space<vmem>>, vector<4x288xf32>,
    %c0_73 = arith.constant 0 : index
    %c0_74 = arith.constant 0 : index
    %71 = vector.load %arg6[%c0_73, %c0_74] : memref<4x342xf32, #tpu.memory_space<vmem>>, vector<4x288xf32>
    %c0_75 = arith.constant 0 : index
    %c1_76 = arith.constant 1 : index
    %72 = vector.load %arg6[%c0_75, %c1_76] : memref<4x342xf32, #tpu.memory_space<vmem>>, vector<4x288xf32>
    %c0_77 = arith.constant 0 : index
    %c2_78 = arith.constant 2 : index
    %73 = vector.load %arg6[%c0_77, %c2_78] : memref<4x342xf32, #tpu.memory_space<vmem>>, vector<4x288xf32>
    %c0_79 = arith.constant 0 : index
    %c18_80 = arith.constant 18 : index
    %74 = vector.load %arg6[%c0_79, %c18_80] : memref<4x342xf32, #tpu.memory_space<vmem>>, vector<4x288xf32>
    %c0_81 = arith.constant 0 : index
    %c19_82 = arith.constant 19 : index
    %75 = vector.load %arg6[%c0_81, %c19_82] : memref<4x342xf32, #tpu.memory_space<vmem>>, vector<4x288xf32>
    %c0_83 = arith.constant 0 : index
    %c20_84 = arith.constant 20 : index
    %76 = vector.load %arg6[%c0_83, %c20_84] : memref<4x342xf32, #tpu.memory_space<vmem>>, vector<4x288xf32>
    %c0_85 = arith.constant 0 : index
    %c36_86 = arith.constant 36 : index
    %77 = vector.load %arg6[%c0_85, %c36_86] : memref<4x342xf32, #tpu.memory_space<vmem>>, vector<4x288xf32>
    %c0_87 = arith.constant 0 : index
    %c37_88 = arith.constant 37 : index
    %78 = vector.load %arg6[%c0_87, %c37_88] : memref<4x342xf32, #tpu.memory_space<vmem>>, vector<4x288xf32>
    %c0_89 = arith.constant 0 : index
    %c38_90 = arith.constant 38 : index
    %79 = vector.load %arg6[%c0_89, %c38_90] : memref<4x342xf32, #tpu.memory_space<vmem>>, vector<4x288xf32>
    %80 = tpu.concatenate %71, %72, %73, %74, %75, %76, %77, %78, %79 in 0 : vector<4x288xf32>, vector<4x288xf32>, vector<4x288xf32>, vector<4x288xf32>, vector<4x288xf32>, vector<4x288xf32>, vector<4x288xf32>, vector<4x288xf32>, vector<4x288xf32> -> vector<36x288xf32>
    %c1_91 = arith.constant 1 : index
    %c0_92 = arith.constant 0 : index
    %c0_93 = arith.constant 0 : index
    %81 = vector.load %arg2[%c1_91, %c0_92, %c0_93] : memref<2x4x36xf32, #tpu.memory_space<vmem>>, vector<1x4x36xf32>
    %82 = vector.shape_cast %81 : vector<1x4x36xf32> to vector<4x36xf32>
    %cst_94 = arith.constant dense<0.000000e+00> : vector<4x288xf32>
    %83 = tpu.matmul %82, %80, %cst_94 {dimension_numbers = #tpu.dot_dimension_numbers<[1], [0], [0], [1], [0, 0, 1, 1], [], []>} : vector<4x36xf32>, vector<36x288xf32>, vector<4x288xf32> -> vector<4x288xf32>
    %c1_95 = arith.constant 1 : index
    %c0_96 = arith.constant 0 : index
    %c0_97 = arith.constant 0 : index
    %84 = vector.load %arg3[%c1_95, %c0_96, %c0_97] : memref<2x4x1xf32, #tpu.memory_space<vmem>>, vector<1x4x1xf32>
    %85 = vector.shape_cast %84 : vector<1x4x1xf32> to vector<4x1xf32>
    %86 = vector.broadcast %85 : vector<4x1xf32> to vector<4x288xf32>
    %87 = arith.addf %83, %86 : vector<4x288xf32>
    %88 = arith.negf %87 : vector<4x288xf32>
    %89 = math.exp %88 : vector<4x288xf32>
    %cst_98 = arith.constant 1.000000e+00 : f32
    %90 = vector.broadcast %cst_98 : f32 to vector<4x288xf32>
    %91 = arith.addf %90, %89 : vector<4x288xf32>
    %92 = arith.divf %90, %91 : vector<4x288xf32>
    %c0_99 = arith.constant 0 : index
    %c0_100 = arith.constant 0 : index
    %c0_101 = arith.constant 0 : index
    %93 = vector.load %arg5[%c0_99, %c0_100, %c0_101] : memref<1x4x288xf32, #tpu.memory_space<vmem>>, vector<1x4x288xf32>
    %94 = vector.shape_cast %93 : vector<1x4x288xf32> to vector<4x288xf32>
    %95 = vector.shape_cast %92 : vector<4x288xf32> to vector<1x4x288xf32>
    tpu.vector_store %arg5[%c0_99, %c0_100, %c0_101], %95 {strides = array<i32>} : memref<1x4x288xf32, #tpu.memory_space<vmem>>, vector<1x4x288xf32>,
    return
  }
  func.func @transform_0(%arg0: i32) -> (i32, i32, i32) {
    %c0_i32 = arith.constant 0 : i32
    %c0_i32_0 = arith.constant 0 : i32
    %c0_i32_1 = arith.constant 0 : i32
    return %arg0, %c0_i32, %c0_i32_0 : i32, i32, i32
  }
  func.func @transform_1(%arg0: i32) -> (i32, i32, i32) {
    %c0_i32 = arith.constant 0 : i32
    %c0_i32_0 = arith.constant 0 : i32
    %c0_i32_1 = arith.constant 0 : i32
    %c0_i32_2 = arith.constant 0 : i32
    return %c0_i32, %c0_i32_0, %c0_i32_1 : i32, i32, i32
  }
  func.func @transform_2(%arg0: i32) -> (i32, i32, i32) {
    %c0_i32 = arith.constant 0 : i32
    %c0_i32_0 = arith.constant 0 : i32
    %c0_i32_1 = arith.constant 0 : i32
    %c0_i32_2 = arith.constant 0 : i32
    return %c0_i32, %c0_i32_0, %c0_i32_1 : i32, i32, i32
  }
  func.func @transform_3(%arg0: i32) -> (i32, i32) {
    %c0_i32 = arith.constant 0 : i32
    %c0_i32_0 = arith.constant 0 : i32
    %c0_i32_1 = arith.constant 0 : i32
    return %c0_i32, %c0_i32_0 : i32, i32
  }
  func.func @transform_4(%arg0: i32) -> (i32, i32, i32) {
    %c0_i32 = arith.constant 0 : i32
    %c0_i32_0 = arith.constant 0 : i32
    %c0_i32_1 = arith.constant 0 : i32
    return %arg0, %c0_i32, %c0_i32_0 : i32, i32, i32
  }
}

</mosaic_0001>

<llo_original>
// kernel: tpu_custom_call.1
$region0: #{tpu_custom_call.1}
  #allocation0 [shape = 'u32[]', space=smem, size = 0x4, offset = 0x4, fixed_abs, tag = 'smem constant byte address 0x4 - core index']
  #allocation1 [shape = 'u32[144,128]{1,0:T(1,128)}', space=vmem, size = 0x12000, scoped, tag = 'internal scratch']
  #allocation2 [shape = 'f32[4,342]{1,0:T(4,128)}', space=vmem, size = 0x1800, scoped, tag = 'scratch operand']
  %s0 = inlined_call_operand.hbm [shape: f32[2,4,256], index: 0, kind: input, shape index: {}]
  %s1 = inlined_call_operand.vmem [shape: f32[2,4,36], index: 1, kind: input, shape index: {}]
  %s2 = inlined_call_operand.vmem [shape: f32[2,4,1], index: 2, kind: input, shape index: {}]
  %s3 = inlined_call_operand.vmem [shape: f32[1,288], index: 3, kind: input, shape index: {}]
  %s4 = inlined_call_operand.hbm [shape: f32[2,4,288], index: 4, kind: output, shape index: {}]
  %s5 = sld [smem:[#allocation0]]
  $region53: #{tpu_custom_call.1} parent=0
    _
  %s7 = ssub.s32 1, %s5
  %s8 = scalar_select 0, %s7, %s5
  $region1: #{tpu_custom_call.1} parent=0
    #allocation3 [shape = 'u8[8192]{0}', space=vmem, size = 0x2000, scoped, tag = 'input window, operand 0']
    #allocation4 [shape = 's32[2]{0}', space=sflag, size = 0x8, scoped, tag = 'scoped memory for tpu_custom_call.1']
    #allocation5 [shape = 's32[2]{0}', space=sflag, size = 0x8, scoped, tag = 'scoped memory for tpu_custom_call.1']
    #allocation6 [shape = 'u8[12288]{0}', space=vmem, size = 0x3000, scoped, tag = 'output window, operand 0']
    %9 = vsyncpa [#allocation4], 0
    %s10 = scalar_lea.sflag [#allocation4], 1
    %11 = vsyncpa %s10, 0
    %12 = vsyncpa [#allocation5], 0
    %s13 = scalar_lea.sflag [#allocation5], 1
    %14 = vsyncpa %s13, 0
    loop: start=0, step=1, limit=4
    $region2: #{tpu_custom_call.1} parent=1 // loop_pre_header
      _
    $region3: #{tpu_custom_call.1} parent=1 // loop_header
      %s16 = sphi 0, %s20
      %p17 = scmp.ge.s32.totalorder %s16, 4
      %s26 = sphi 0, %s28
      %s29 = sphi 0, %s26
      %s30 = sphi 0, %s29
      %s46 = sphi 0, %s30
      %s50 = sphi 0, %s50
      %s52 = sphi 0, %s50
      %s53 = sphi 0, %s52
      %s67 = sphi 0, %s53
      %s71 = sphi 0, %s71
      %s73 = sphi 0, %s71
      %s74 = sphi 0, %s73
      %s88 = sphi 0, %s74
      %s92 = sphi 0, %s92
      %s94 = sphi 0, %s92
      %s95 = sphi 0, %s94
      %s109 = sphi 0, %s95
      %s115 = sphi 0, %s117
      %s118 = sphi 0, %s115
      %s119 = sphi 0, %s118
      %s135 = sphi 0, %s119
    $region4: #{tpu_custom_call.1} parent=1 // loop_header_branch
      %19 = sbr.rel (%p17) target = $region8
    $region5: #{tpu_custom_call.1} parent=1 // loop_body
      %s21 = ssub.s32 %s16, 1
      %s22 = ssub.s32 %s16, 2
      %s23 = sadd.s32 %s16, 1
      %s24 = ssub.s32 %s16, %s23
      %p25 = scmp.eq.s32.totalorder %s24, 0
      %s27 = sadd.s32 %s26, 1
      %s28 = scalar_select %p25, %s26, %s27
      %p31 = pneg %p25
      %p32 = scmp.eq.s32.totalorder %s16, 1
      %p33 = por %p31, %p32
      %p34 = scmp.ne.s32.totalorder %s26, %s29
      %p35 = scmp.eq.s32.totalorder %s16, 0
      %p36 = por %p34, %p35
      %p37 = scmp.ne.s32.totalorder %s26, %s29
      %p38 = scmp.eq.s32.totalorder %s21, 1
      %p39 = por %p37, %p38
      %p40 = scmp.ne.s32.totalorder %s29, %s30
      %p41 = scmp.eq.s32.totalorder %s21, 0
      %p42 = por %p40, %p41
      %p43 = scmp.ne.s32.totalorder %s29, %s30
      %p44 = scmp.eq.s32.totalorder %s22, 1
      %p45 = por %p43, %p44
      %p47 = scmp.ne.s32.totalorder %s30, %s46
      %p48 = scmp.eq.s32.totalorder %s22, 0
      %p49 = por %p47, %p48
      %s51 = sadd.s32 %s50, 1
      %p54 = scmp.eq.s32.totalorder %s16, 1
      %p55 = scmp.ne.s32.totalorder %s50, %s52
      %p56 = scmp.eq.s32.totalorder %s16, 0
      %p57 = por %p55, %p56
      %p58 = scmp.ne.s32.totalorder %s50, %s52
      %p59 = scmp.eq.s32.totalorder %s21, 1
      %p60 = por %p58, %p59
      %p61 = scmp.ne.s32.totalorder %s52, %s53
      %p62 = scmp.eq.s32.totalorder %s21, 0
      %p63 = por %p61, %p62
      %p64 = scmp.ne.s32.totalorder %s52, %s53
      %p65 = scmp.eq.s32.totalorder %s22, 1
      %p66 = por %p64, %p65
      %p68 = scmp.ne.s32.totalorder %s53, %s67
      %p69 = scmp.eq.s32.totalorder %s22, 0
      %p70 = por %p68, %p69
      %s72 = sadd.s32 %s71, 1
      %p75 = scmp.eq.s32.totalorder %s16, 1
      %p76 = scmp.ne.s32.totalorder %s71, %s73
      %p77 = scmp.eq.s32.totalorder %s16, 0
      %p78 = por %p76, %p77
      %p79 = scmp.ne.s32.totalorder %s71, %s73
      %p80 = scmp.eq.s32.totalorder %s21, 1
      %p81 = por %p79, %p80
      %p82 = scmp.ne.s32.totalorder %s73, %s74
      %p83 = scmp.eq.s32.totalorder %s21, 0
      %p84 = por %p82, %p83
      %p85 = scmp.ne.s32.totalorder %s73, %s74
      %p86 = scmp.eq.s32.totalorder %s22, 1
      %p87 = por %p85, %p86
      %p89 = scmp.ne.s32.totalorder %s74, %s88
      %p90 = scmp.eq.s32.totalorder %s22, 0
      %p91 = por %p89, %p90
      %s93 = sadd.s32 %s92, 1
      %p96 = scmp.eq.s32.totalorder %s16, 1
      %p97 = scmp.ne.s32.totalorder %s92, %s94
      %p98 = scmp.eq.s32.totalorder %s16, 0
      %p99 = por %p97, %p98
      %p100 = scmp.ne.s32.totalorder %s92, %s94
      %p101 = scmp.eq.s32.totalorder %s21, 1
      %p102 = por %p100, %p101
      %p103 = scmp.ne.s32.totalorder %s94, %s95
      %p104 = scmp.eq.s32.totalorder %s21, 0
      %p105 = por %p103, %p104
      %p106 = scmp.ne.s32.totalorder %s94, %s95
      %p107 = scmp.eq.s32.totalorder %s22, 1
      %p108 = por %p106, %p107
      %p110 = scmp.ne.s32.totalorder %s95, %s109
      %p111 = scmp.eq.s32.totalorder %s22, 0
      %p112 = por %p110, %p111
      %s113 = ssub.s32 %s16, %s23
      %p114 = scmp.eq.s32.totalorder %s113, 0
      %s116 = sadd.s32 %s115, 1
      %s117 = scalar_select %p114, %s115, %s116
      %p120 = pneg %p114
      %p121 = scmp.eq.s32.totalorder %s16, 1
      %p122 = por %p120, %p121
      %p123 = scmp.ne.s32.totalorder %s115, %s118
      %p124 = scmp.eq.s32.totalorder %s16, 0
      %p125 = por %p123, %p124
      %p126 = scmp.ne.s32.totalorder %s115, %s118
      %p127 = scmp.eq.s32.totalorder %s21, 1
      %p128 = por %p126, %p127
      %p129 = scmp.ne.s32.totalorder %s118, %s119
      %p130 = scmp.eq.s32.totalorder %s21, 0
      %p131 = por %p129, %p130
      %p132 = scmp.ne.s32.totalorder %s118, %s119
      %p133 = scmp.eq.s32.totalorder %s22, 1
      %p134 = por %p132, %p133
      %p136 = scmp.ne.s32.totalorder %s119, %s135
      %p137 = scmp.eq.s32.totalorder %s22, 0
      %p138 = por %p136, %p137
      %p139 = scmp.le.s32.totalorder 1, %s16
      %p140 = scmp.lt.s32.totalorder %s16, 3
      %p141 = pnand %p139, %p140
      %p142 = pneg %p141
      // Predicated region
      $region9: #{tpu_custom_call.1} parent=5 // pred_check
        _
      $region10: #{tpu_custom_call.1} parent=5 // pred_check_branch
        %144 = sbr.rel (%p141) target = $region12
      $region11: #{tpu_custom_call.1} parent=5 // pred_region
        %s145 = ssub.s32 %s16, 1
        // Predicated region
        $region13: #{tpu_custom_call.1} parent=11 // pred_check
          %p146 = pneg %p63
        $region14: #{tpu_custom_call.1} parent=11 // pred_check_branch
          %148 = sbr.rel (%p146) target = $region16
        $region15: #{tpu_custom_call.1} parent=11 // pred_region
          _
        $region16: #{tpu_custom_call.1} parent=11 // pred_fallthru
          _
        // Predicated region
        $region17: #{tpu_custom_call.1} parent=11 // pred_check
          %p149 = pneg %p84
        $region18: #{tpu_custom_call.1} parent=11 // pred_check_branch
          %151 = sbr.rel (%p149) target = $region20
        $region19: #{tpu_custom_call.1} parent=11 // pred_region
          _
        $region20: #{tpu_custom_call.1} parent=11 // pred_fallthru
          _
        // Predicated region
        $region21: #{tpu_custom_call.1} parent=11 // pred_check
          %p152 = pneg %p105
        $region22: #{tpu_custom_call.1} parent=11 // pred_check_branch
          %154 = sbr.rel (%p152) target = $region24
        $region23: #{tpu_custom_call.1} parent=11 // pred_region
          _
        $region24: #{tpu_custom_call.1} parent=11 // pred_fallthru
          _
      $region12: #{tpu_custom_call.1} parent=5 // pred_fallthru
        _
      %p155 = scmp.lt.s32.totalorder %s16, 2
      // Predicated region
      $region25: #{tpu_custom_call.1} parent=5 // pred_check
        %p156 = pneg %p155
      $region26: #{tpu_custom_call.1} parent=5 // pred_check_branch
        %158 = sbr.rel (%p156) target = $region28
      $region27: #{tpu_custom_call.1} parent=5 // pred_region
        // Predicated region
        $region29: #{tpu_custom_call.1} parent=27 // pred_check
          %p159 = pneg %p36
        $region30: #{tpu_custom_call.1} parent=27 // pred_check_branch
          %161 = sbr.rel (%p159) target = $region32
        $region31: #{tpu_custom_call.1} parent=27 // pred_region
          %s162 = sand.u32 %s26, 1
          %s163 = scalar_lea.sflag [#allocation4], %s162
          %s164 = sand.u32 %s26, 1
          %s165 = smul.addr %s164, 8
          %s166 = scalar_lea.vmem [#allocation3], %s165
          %s168 = ssub.s32 128, 128
          %169 = vsyncadd %s163, %s168
          %s170 = smul.addr %s16, 2
          %s171 = smul.addr %s170, 64
          %s172 = scalar_lea.hbm %s0, %s171
          %s174 = sshll.u32 %s166, 4
          %s175 = int_to_ptr.vmem [resolvable:$true] %s174
          %177 = dma.hbm_to_vmem [thread:$0]  %s172, 128, %s175, %s163
        $region32: #{tpu_custom_call.1} parent=27 // pred_fallthru
          _
      $region28: #{tpu_custom_call.1} parent=5 // pred_fallthru
        _
      %p178 = scmp.le.s32.totalorder 1, %s16
      %p179 = scmp.lt.s32.totalorder %s16, 3
      %p180 = pnand %p178, %p179
      %p181 = pneg %p180
      // Predicated region
      $region33: #{tpu_custom_call.1} parent=5 // pred_check
        _
      $region34: #{tpu_custom_call.1} parent=5 // pred_check_branch
        %183 = sbr.rel (%p180) target = $region36
      $region35: #{tpu_custom_call.1} parent=5 // pred_region
        %s184 = ssub.s32 %s16, 1
        %s185 = sand.u32 %s29, 1
        %s186 = scalar_lea.sflag [#allocation4], %s185
        %s187 = sand.u32 %s29, 1
        %s188 = smul.addr %s187, 8
        %s189 = scalar_lea.vmem [#allocation3], %s188
        // Predicated region
        $region37: #{tpu_custom_call.1} parent=35 // pred_check
          %p190 = pneg %p42
        $region38: #{tpu_custom_call.1} parent=35 // pred_check_branch
          %192 = sbr.rel (%p190) target = $region40
        $region39: #{tpu_custom_call.1} parent=35 // pred_region
          %193 = dma.done %s186, 128
        $region40: #{tpu_custom_call.1} parent=35 // pred_fallthru
          _
        %s194 = sand.u32 %s29, 1
        %s195 = scalar_lea.sflag [#allocation4], %s194
        %s196 = sand.u32 %s29, 1
        %s197 = smul.addr %s196, 8
        %s198 = scalar_lea.vmem [#allocation3], %s197
        %p199 = pneg %p42
        %p200 = pneg %p39
        %p201 = pneg %p63
        %p202 = pneg %p60
        %p203 = pneg %p84
        %p204 = pneg %p81
        %p205 = pneg %p105
        %p206 = pneg %p102
        %p207 = pneg %p131
        %p208 = pneg %p128
        %s209 = sand.u32 %s118, 1
        %s210 = scalar_lea.sflag [#allocation5], %s209
        %s211 = sand.u32 %s118, 1
        %s212 = smul.addr %s211, 12
        %s213 = scalar_lea.vmem [#allocation6], %s212
        %214 = vst [vmem:[#allocation2] sm:$0xff] 0.0
        %vm215 = vcmask 699392
        %216 = vst.msk [vmem:[#allocation2 + $0x8] sm:$0xf] %vm215, 0.0
        %v217 = vld [vmem:[%s3] sm:$0x7]
        %v218 = vld [vmem:[%s189] sm:$0xf]
        %220 = vrot.lane.b32.xlu0 %v218, 19
        %v221 = vpop.permute.xlu0 %220
        %vm223 = vcmask 281752
        %224 = vst.msk [vmem:[#allocation2] sm:$0xf] %vm223, %v221
        %v225 = vld [vmem:[%s189] sm:$0xf]
        %227 = vrot.lane.b32.xlu0 %v225, 21
        %v228 = vpop.permute.xlu0 %227
        %vm230 = vcmask 429352
        %231 = vst.msk [vmem:[#allocation2] sm:$0xf] %vm230, %v228
        %v232 = vld [vmem:[%s189] sm:$0xf]
        %234 = vrot.lane.b32.xlu0 %v232, 23
        %v235 = vpop.permute.xlu0 %234
        %vm237 = vcmask 576952
        %238 = vst.msk [vmem:[#allocation2] sm:$0xf] %vm237, %v235
        %v239 = vld [vmem:[%s189] sm:$0xf]
        %241 = vrot.lane.b32.xlu0 %v239, 25
        %v242 = vpop.permute.xlu0 %241
        %vm244 = vcmask 724552
        %245 = vst.msk [vmem:[#allocation2] sm:$0xf] %vm244, %v242
        %v246 = vld [vmem:[%s189] sm:$0xf]
        %248 = vrot.lane.b32.xlu0 %v246, 27
        %v249 = vpop.permute.xlu0 %248
        %vm251 = vcmask 872152
        %252 = vst.msk [vmem:[#allocation2] sm:$0xf] %vm251, %v249
        %v253 = vld [vmem:[%s189] sm:$0xf]
        %255 = vrot.lane.b32.xlu0 %v253, 29
        %v256 = vpop.permute.xlu0 %255
        %vm258 = vcmask 1019752
        %259 = vst.msk [vmem:[#allocation2] sm:$0xf] %vm258, %v256
        %v260 = vld [vmem:[%s189] sm:$0xf]
        %262 = vrot.lane.b32.xlu0 %v260, 31
        %v263 = vpop.permute.xlu0 %262
        %v264 = vrot.slane %v263, 4
        %vm265 = vcmask 252928
        %v266 = vsel %vm265, %v264, %v263
        %vm268 = vcmask 1044472
        %vm269 = vcmask 121860
        %vm270 = vmor %vm269, %vm268
        %271 = vst.msk [vmem:[#allocation2] sm:$0xff] %vm270, %v266
        %v272 = vld [vmem:[%s189] sm:$0xf]
        %274 = vrot.lane.b32.xlu0 %v272, 33
        %v275 = vpop.permute.xlu0 %274
        %vm277 = vcmask 265352
        %278 = vst.msk [vmem:[#allocation2 + $0x4] sm:$0xf] %vm277, %v275
        %v279 = vld [vmem:[%s189 + $0x4] sm:$0xf]
        %281 = vrot.lane.b32.xlu0 %v279, 35
        %v282 = vpop.permute.xlu0 %281
        %vm284 = vcmask 412952
        %285 = vst.msk [vmem:[#allocation2 + $0x4] sm:$0xf] %vm284, %v282
        %v286 = vld [vmem:[%s189 + $0x4] sm:$0xf]
        %288 = vrot.lane.b32.xlu0 %v286, 37
        %v289 = vpop.permute.xlu0 %288
        %vm291 = vcmask 560552
        %292 = vst.msk [vmem:[#allocation2 + $0x4] sm:$0xf] %vm291, %v289
        %v293 = vld [vmem:[%s189 + $0x4] sm:$0xf]
        %295 = vrot.lane.b32.xlu0 %v293, 39
        %v296 = vpop.permute.xlu0 %295
        %vm298 = vcmask 708152
        %299 = vst.msk [vmem:[#allocation2 + $0x4] sm:$0xf] %vm298, %v296
        %v300 = vld [vmem:[%s189 + $0x4] sm:$0xf]
        %302 = vrot.lane.b32.xlu0 %v300, 41
        %v303 = vpop.permute.xlu0 %302
        %vm305 = vcmask 855752
        %306 = vst.msk [vmem:[#allocation2 + $0x4] sm:$0xf] %vm305, %v303
        %v307 = vld [vmem:[%s189 + $0x4] sm:$0xf]
        %309 = vrot.lane.b32.xlu0 %v307, 43
        %v310 = vpop.permute.xlu0 %309
        %vm312 = vcmask 1003352
        %313 = vst.msk [vmem:[#allocation2 + $0x4] sm:$0xf] %vm312, %v310
        %v314 = vld [vmem:[%s189 + $0x4] sm:$0xf]
        %316 = vrot.lane.b32.xlu0 %v314, 45
        %v317 = vpop.permute.xlu0 %316
        %v318 = vrot.slane %v317, 4
        %vm319 = vcmask 367616
        %v320 = vsel %vm319, %v318, %v317
        %vm322 = vcmask 1044456
        %vm323 = vcmask 105476
        %vm324 = vmor %vm323, %vm322
        %325 = vst.msk [vmem:[#allocation2 + $0x4] sm:$0xff] %vm324, %v320
        %v326 = vld [vmem:[%s189 + $0x4] sm:$0xf]
        %328 = vrot.lane.b32.xlu0 %v326, 47
        %v329 = vpop.permute.xlu0 %328
        %vm331 = vcmask 248952
        %332 = vst.msk [vmem:[#allocation2 + $0x8] sm:$0xf] %vm331, %v329
        %v333 = vld [vmem:[%s189 + $0x4] sm:$0xf]
        %335 = vrot.lane.b32.xlu0 %v333, 49
        %v336 = vpop.permute.xlu0 %335
        %vm338 = vcmask 396552
        %339 = vst.msk [vmem:[#allocation2 + $0x8] sm:$0xf] %vm338, %v336
        %v340 = vld [vmem:[#allocation2] sm:$0xff]
        %v341 = vld [vmem:[#allocation2 + $0x8] sm:$0xf]
        %v344 = vcombine.high %v340, %v340
        %v346 = vcombine.low %v340, %v340
        %v347 = vcombine.low %v341, %v341
        %348 = vrot.lane.b32.xlu0 %v346, 127
        %v349 = vpop.permute.xlu0 %348
        %350 = vrot.lane.b32.xlu0 %v340, 127
        %v351 = vpop.permute.xlu0 %350
        %352 = vrot.lane.b32.xlu0 %v347, 127
        %v353 = vpop.permute.xlu0 %352
        %vm354 = vcmask 1039360
        %v355 = vsel %vm354, %v349, %v351
        %v356 = vsel %vm354, %v351, %v353
        %360 = vrot.lane.b32.xlu0 %v340, 126
        %v361 = vpop.permute.xlu0 %360
        %362 = vrot.lane.b32.xlu0 %v344, 126
        %v363 = vpop.permute.xlu0 %362
        %364 = vrot.lane.b32.xlu0 %v341, 126
        %v365 = vpop.permute.xlu0 %364
        %vm366 = vcmask 1031168
        %v367 = vsel %vm366, %v361, %v363
        %v368 = vsel %vm366, %v363, %v365
        %372 = vrot.lane.b32.xlu0 %v346, 110
        %v373 = vpop.permute.xlu0 %372
        %374 = vrot.lane.b32.xlu0 %v340, 110
        %v375 = vpop.permute.xlu0 %374
        %376 = vrot.lane.b32.xlu0 %v347, 110
        %v377 = vpop.permute.xlu0 %376
        %vm378 = vcmask 900096
        %v379 = vsel %vm378, %v373, %v375
        %v380 = vsel %vm378, %v375, %v377
        %384 = vrot.lane.b32.xlu0 %v340, 109
        %v385 = vpop.permute.xlu0 %384
        %386 = vrot.lane.b32.xlu0 %v344, 109
        %v387 = vpop.permute.xlu0 %386
        %388 = vrot.lane.b32.xlu0 %v341, 109
        %v389 = vpop.permute.xlu0 %388
        %vm390 = vcmask 891904
        %v391 = vsel %vm390, %v385, %v387
        %v392 = vsel %vm390, %v387, %v389
        %396 = vrot.lane.b32.xlu0 %v346, 108
        %v397 = vpop.permute.xlu0 %396
        %398 = vrot.lane.b32.xlu0 %v340, 108
        %v399 = vpop.permute.xlu0 %398
        %400 = vrot.lane.b32.xlu0 %v347, 108
        %v401 = vpop.permute.xlu0 %400
        %vm402 = vcmask 883712
        %v403 = vsel %vm402, %v397, %v399
        %v404 = vsel %vm402, %v399, %v401
        %408 = vrot.lane.b32.xlu0 %v340, 92
        %v409 = vpop.permute.xlu0 %408
        %410 = vrot.lane.b32.xlu0 %v344, 92
        %v411 = vpop.permute.xlu0 %410
        %412 = vrot.lane.b32.xlu0 %v341, 92
        %v413 = vpop.permute.xlu0 %412
        %vm414 = vcmask 752640
        %v415 = vsel %vm414, %v409, %v411
        %v416 = vsel %vm414, %v411, %v413
        %420 = vrot.lane.b32.xlu0 %v346, 91
        %v421 = vpop.permute.xlu0 %420
        %422 = vrot.lane.b32.xlu0 %v340, 91
        %v423 = vpop.permute.xlu0 %422
        %424 = vrot.lane.b32.xlu0 %v347, 91
        %v425 = vpop.permute.xlu0 %424
        %vm426 = vcmask 744448
        %v427 = vsel %vm426, %v421, %v423
        %v428 = vsel %vm426, %v423, %v425
        %432 = vrot.lane.b32.xlu0 %v340, 90
        %v433 = vpop.permute.xlu0 %432
        %434 = vrot.lane.b32.xlu0 %v344, 90
        %v435 = vpop.permute.xlu0 %434
        %436 = vrot.lane.b32.xlu0 %v341, 90
        %v437 = vpop.permute.xlu0 %436
        %vm438 = vcmask 736256
        %v439 = vsel %vm438, %v433, %v435
        %v440 = vsel %vm438, %v435, %v437
        %vm441 = vcmask 1043456
        %v442 = vsel %vm441, %v340, %v355
        %v443 = vsel %vm441, %v344, %v356
        %v444 = vsel %vm441, %v341, %v353
        %v445 = vsel %vm441, %v367, %v379
        %v446 = vsel %vm441, %v368, %v380
        %v447 = vsel %vm441, %v365, %v377
        %v448 = vsel %vm441, %v391, %v403
        %v449 = vsel %vm441, %v392, %v404
        %v450 = vsel %vm441, %v389, %v401
        %v451 = vsel %vm441, %v415, %v427
        %v452 = vsel %vm441, %v416, %v428
        %v453 = vsel %vm441, %v413, %v425
        %v454 = vld [vmem:[%s1] sm:$0xf]
        %v455 = vld [vmem:[%s2] sm:$0xf]
        %457 = vset.pattern.permute.xlu0 0
        %458 = vperm.xlu0 %457, %v455
        %v459 = vpop.permute.xlu0 %458
        %vm461 = vcmask 293888
        %v463 = vsel %vm461, %v454, 0
        %v465 = vsel %vm441, %v439, 0
        %v467 = vsel %vm441, %v440, 0
        %v469 = vsel %vm441, %v437, 0
        %471 = vmatprep.subr.mxu0 %v443
        %472 = vmatpush1.msra.mxu0 %v442
        %473 = vmatprep.subr.mxu0 %v446
        %474 = vmatpush1.msra.mxu0 %v445
        %475 = vmatprep.subr.mxu0 %v449
        %476 = vmatpush1.msra.mxu0 %v448
        %477 = vmatprep.subr.mxu0 %v452
        %478 = vmatpush1.msra.mxu0 %v451
        %479 = vmatprep.subr.mxu0 %v467
        %480 = vmatpush1.msra.mxu0 %v465
        %481 = vmatprep.subr.mxu0 0.0
        %482 = vmatpush1.msra.mxu0 0.0
        %483 = vmatprep.subr.mxu0 0.0
        %484 = vmatpush1.msra.mxu0 0.0
        %485 = vmatprep.subr.mxu0 0.0
        %486 = vmatpush1.msra.mxu0 0.0
        %487 = vmatprep.subr.mxu0 0.0
        %488 = vmatpush1.msra.mxu0 0.0
        %489 = vmatprep.subr.mxu0 0.0
        %490 = vmatpush1.msra.mxu0 0.0
        %491 = vmatprep.subr.mxu0 0.0
        %492 = vmatpush1.msra.mxu0 0.0
        %493 = vmatprep.subr.mxu0 0.0
        %494 = vmatpush1.msra.mxu0 0.0
        %495 = vmatprep.subr.mxu0 0.0
        %496 = vmatpush1.msra.mxu0 0.0
        %497 = vmatprep.subr.mxu0 0.0
        %498 = vmatpush1.msra.mxu0 0.0
        %499 = vmatprep.subr.mxu0 0.0
        %500 = vmatpush1.msra.mxu0 0.0
        %501 = vmatprep.subr.mxu0 0.0
        %502 = vmatpush1.msra.mxu0 0.0
        %503 = vmatprep.subr.mxu0 0.0
        %504 = vmatpush1.msra.mxu0 0.0
        %505 = vmatprep.subr.mxu0 0.0
        %506 = vmatpush1.msra.mxu0 0.0
        %507 = vmatprep.subr.mxu0 0.0
        %508 = vmatpush1.msra.mxu0 0.0
        %509 = vmatprep.subr.mxu0 0.0
        %510 = vmatpush1.msra.mxu0 0.0
        %511 = vmatprep.subr.mxu0 0.0
        %512 = vmatpush1.msra.mxu0 0.0
        %513 = vmatprep.subr.mxu0 0.0
        %514 = vmatpush1.msra.mxu0 0.0
        %515 = vmatprep.subr.mxu0 0.0
        %516 = vmatpush1.msra.mxu0 0.0
        %517 = vmatprep.subr.mxu0 0.0
        %518 = vmatpush1.msra.mxu0 0.0
        %519 = vmatprep.subr.mxu0 0.0
        %520 = vmatpush1.msra.mxu0 0.0
        %521 = vmatprep.subr.mxu0 0.0
        %522 = vmatpush1.msra.mxu0 0.0
        %523 = vmatprep.subr.mxu0 0.0
        %524 = vmatpush1.msra.mxu0 0.0
        %525 = vmatprep.subr.mxu0 0.0
        %526 = vmatpush1.msra.mxu0 0.0
        %527 = vmatprep.subr.mxu0 0.0
        %528 = vmatpush1.msra.mxu0 0.0
        %529 = vmatprep.subr.mxu0 0.0
        %530 = vmatpush1.msra.mxu0 0.0
        %531 = vmatprep.subr.mxu0 0.0
        %532 = vmatpush1.msra.mxu0 0.0
        %533 = vmatprep.subr.mxu0 0.0
        %534 = vmatpush1.msra.mxu0 0.0
        %535 = vmatprep.mubr.f32.mxu0 0.0
        %536 = vmatmul.mubr.f32.gmra.mrb[0].mxu0 %v463
        %v537 = vpop.f32.mrb[0].mxu0
        %v538 = vadd.f32 %v459, %v537
        %v539 = vpop.f32.mrb[0].mxu0
        %v540 = vadd.f32 %v459, %v539
        %541 = vdwg.mxu0
        %542 = vmatprep.subr.mxu0 0.0
        %543 = vmatpush1.msra.mxu0 %v444
        %544 = vmatprep.subr.mxu0 0.0
        %545 = vmatpush1.msra.mxu0 %v447
        %546 = vmatprep.subr.mxu0 0.0
        %547 = vmatpush1.msra.mxu0 %v450
        %548 = vmatprep.subr.mxu0 0.0
        %549 = vmatpush1.msra.mxu0 %v453
        %550 = vmatprep.subr.mxu0 0.0
        %551 = vmatpush1.msra.mxu0 %v469
        %552 = vmatprep.subr.mxu0 0.0
        %553 = vmatpush1.msra.mxu0 0.0
        %554 = vmatprep.subr.mxu0 0.0
        %555 = vmatpush1.msra.mxu0 0.0
        %556 = vmatprep.subr.mxu0 0.0
        %557 = vmatpush1.msra.mxu0 0.0
        %558 = vmatprep.subr.mxu0 0.0
        %559 = vmatpush1.msra.mxu0 0.0
        %560 = vmatprep.subr.mxu0 0.0
        %561 = vmatpush1.msra.mxu0 0.0
        %562 = vmatprep.subr.mxu0 0.0
        %563 = vmatpush1.msra.mxu0 0.0
        %564 = vmatprep.subr.mxu0 0.0
        %565 = vmatpush1.msra.mxu0 0.0
        %566 = vmatprep.subr.mxu0 0.0
        %567 = vmatpush1.msra.mxu0 0.0
        %568 = vmatprep.subr.mxu0 0.0
        %569 = vmatpush1.msra.mxu0 0.0
        %570 = vmatprep.subr.mxu0 0.0
        %571 = vmatpush1.msra.mxu0 0.0
        %572 = vmatprep.subr.mxu0 0.0
        %573 = vmatpush1.msra.mxu0 0.0
        %574 = vmatprep.subr.mxu0 0.0
        %575 = vmatpush1.msra.mxu0 0.0
        %576 = vmatprep.subr.mxu0 0.0
        %577 = vmatpush1.msra.mxu0 0.0
        %578 = vmatprep.subr.mxu0 0.0
        %579 = vmatpush1.msra.mxu0 0.0
        %580 = vmatprep.subr.mxu0 0.0
        %581 = vmatpush1.msra.mxu0 0.0
        %582 = vmatprep.subr.mxu0 0.0
        %583 = vmatpush1.msra.mxu0 0.0
        %584 = vmatprep.subr.mxu0 0.0
        %585 = vmatpush1.msra.mxu0 0.0
        %586 = vmatprep.subr.mxu0 0.0
        %587 = vmatpush1.msra.mxu0 0.0
        %588 = vmatprep.subr.mxu0 0.0
        %589 = vmatpush1.msra.mxu0 0.0
        %590 = vmatprep.subr.mxu0 0.0
        %591 = vmatpush1.msra.mxu0 0.0
        %592 = vmatprep.subr.mxu0 0.0
        %593 = vmatpush1.msra.mxu0 0.0
        %594 = vmatprep.subr.mxu0 0.0
        %595 = vmatpush1.msra.mxu0 0.0
        %596 = vmatprep.subr.mxu0 0.0
        %597 = vmatpush1.msra.mxu0 0.0
        %598 = vmatprep.subr.mxu0 0.0
        %599 = vmatpush1.msra.mxu0 0.0
        %600 = vmatprep.subr.mxu0 0.0
        %601 = vmatpush1.msra.mxu0 0.0
        %602 = vmatprep.subr.mxu0 0.0
        %603 = vmatpush1.msra.mxu0 0.0
        %604 = vmatprep.subr.mxu0 0.0
        %605 = vmatpush1.msra.mxu0 0.0
        %606 = vmatprep.mubr.f32.mxu0 0.0
        %607 = vmatmul.mubr.f32.gmra.mrb[0].mxu0 %v463
        %v608 = vpop.f32.mrb[0].mxu0
        %v609 = vadd.f32 %v459, %v608
        %v610 = vpop.f32.mrb[0].mxu0
        %611 = vdwg.mxu0
        %v613 = vlaneseq
        %v614 = vshrl.u32 %v613, 7
        %v615 = vsub.s32 0, %v614
        %v616 = vrot.slane %v217, %v615
        %v617 = vlaneseq
        %v618 = vshrl.u32 %v617, 7
        %v619 = vsub.s32 1, %v618
        %v620 = vrot.slane %v217, %v619
        %v621 = vlaneseq
        %v622 = vshrl.u32 %v621, 7
        %v623 = vsub.s32 2, %v622
        %v624 = vrot.slane %v217, %v623
        %v628 = vmul.f32 %v538, %v616
        %v629 = vmul.f32 %v540, %v620
        %v630 = vmul.f32 %v609, %v624
        %v634 = vcombine.low %v628, %v629
        %635 = vrot.lane.b32.xlu0 %v634, 19
        %v636 = vpop.permute.xlu0 %635
        %637 = vrot.lane.b32.xlu0 %v630, 19
        %v638 = vpop.permute.xlu0 %637
        %v639 = vrot.slane %v636, 4
        %vm640 = vcmask 154624
        %v641 = vsel %vm640, %v639, %v636
        %v642 = vsel %vm640, %v639, %v638
        %vm645 = vcmask 1043608
        %vm646 = vcmask 1047556
        %vm647 = vmor %vm646, %vm645
        %648 = vst.msk [vmem:[#allocation2] sm:$0xff] %vm647, %v641
        %vm649 = vcmask 412672
        %650 = vst.msk [vmem:[#allocation2 + $0x8] sm:$0xf] %vm649, %v642
        %v651 = vld [vmem:[#allocation2] sm:$0xff]
        %v652 = vld [vmem:[#allocation2 + $0x8] sm:$0xf]
        %v655 = vcombine.high %v651, %v651
        %v657 = vcombine.low %v651, %v651
        %v658 = vcombine.low %v652, %v652
        %659 = vrot.lane.b32.xlu0 %v657, 127
        %v660 = vpop.permute.xlu0 %659
        %661 = vrot.lane.b32.xlu0 %v651, 127
        %v662 = vpop.permute.xlu0 %661
        %663 = vrot.lane.b32.xlu0 %v658, 127
        %v664 = vpop.permute.xlu0 %663
        %v665 = vsel %vm354, %v660, %v662
        %v666 = vsel %vm354, %v662, %v664
        %670 = vrot.lane.b32.xlu0 %v651, 126
        %v671 = vpop.permute.xlu0 %670
        %672 = vrot.lane.b32.xlu0 %v655, 126
        %v673 = vpop.permute.xlu0 %672
        %674 = vrot.lane.b32.xlu0 %v652, 126
        %v675 = vpop.permute.xlu0 %674
        %v676 = vsel %vm366, %v671, %v673
        %v677 = vsel %vm366, %v673, %v675
        %681 = vrot.lane.b32.xlu0 %v657, 110
        %v682 = vpop.permute.xlu0 %681
        %683 = vrot.lane.b32.xlu0 %v651, 110
        %v684 = vpop.permute.xlu0 %683
        %685 = vrot.lane.b32.xlu0 %v658, 110
        %v686 = vpop.permute.xlu0 %685
        %v687 = vsel %vm378, %v682, %v684
        %v688 = vsel %vm378, %v684, %v686
        %692 = vrot.lane.b32.xlu0 %v651, 109
        %v693 = vpop.permute.xlu0 %692
        %694 = vrot.lane.b32.xlu0 %v655, 109
        %v695 = vpop.permute.xlu0 %694
        %696 = vrot.lane.b32.xlu0 %v652, 109
        %v697 = vpop.permute.xlu0 %696
        %v698 = vsel %vm390, %v693, %v695
        %v699 = vsel %vm390, %v695, %v697
        %703 = vrot.lane.b32.xlu0 %v657, 108
        %v704 = vpop.permute.xlu0 %703
        %705 = vrot.lane.b32.xlu0 %v651, 108
        %v706 = vpop.permute.xlu0 %705
        %707 = vrot.lane.b32.xlu0 %v658, 108
        %v708 = vpop.permute.xlu0 %707
        %v709 = vsel %vm402, %v704, %v706
        %v710 = vsel %vm402, %v706, %v708
        %714 = vrot.lane.b32.xlu0 %v651, 92
        %v715 = vpop.permute.xlu0 %714
        %716 = vrot.lane.b32.xlu0 %v655, 92
        %v717 = vpop.permute.xlu0 %716
        %718 = vrot.lane.b32.xlu0 %v652, 92
        %v719 = vpop.permute.xlu0 %718
        %v720 = vsel %vm414, %v715, %v717
        %v721 = vsel %vm414, %v717, %v719
        %725 = vrot.lane.b32.xlu0 %v657, 91
        %v726 = vpop.permute.xlu0 %725
        %727 = vrot.lane.b32.xlu0 %v651, 91
        %v728 = vpop.permute.xlu0 %727
        %729 = vrot.lane.b32.xlu0 %v658, 91
        %v730 = vpop.permute.xlu0 %729
        %v731 = vsel %vm426, %v726, %v728
        %v732 = vsel %vm426, %v728, %v730
        %736 = vrot.lane.b32.xlu0 %v651, 90
        %v737 = vpop.permute.xlu0 %736
        %738 = vrot.lane.b32.xlu0 %v655, 90
        %v739 = vpop.permute.xlu0 %738
        %740 = vrot.lane.b32.xlu0 %v652, 90
        %v741 = vpop.permute.xlu0 %740
        %v742 = vsel %vm438, %v737, %v739
        %v743 = vsel %vm438, %v739, %v741
        %v744 = vsel %vm441, %v651, %v665
        %v745 = vsel %vm441, %v655, %v666
        %v746 = vsel %vm441, %v652, %v664
        %v747 = vsel %vm441, %v676, %v687
        %v748 = vsel %vm441, %v677, %v688
        %v749 = vsel %vm441, %v675, %v686
        %v750 = vsel %vm441, %v698, %v709
        %v751 = vsel %vm441, %v699, %v710
        %v752 = vsel %vm441, %v697, %v708
        %v753 = vsel %vm441, %v720, %v731
        %v754 = vsel %vm441, %v721, %v732
        %v755 = vsel %vm441, %v719, %v730
        %s756 = scalar_lea.vmem %s1, 4
        %v757 = vld [vmem:[%s756] sm:$0xf]
        %s758 = scalar_lea.vmem %s2, 4
        %v759 = vld [vmem:[%s758] sm:$0xf]
        %761 = vset.pattern.permute.xlu0 0
        %762 = vperm.xlu0 %761, %v759
        %v763 = vpop.permute.xlu0 %762
        %v766 = vsel %vm461, %v757, 0
        %v768 = vsel %vm441, %v742, 0
        %v770 = vsel %vm441, %v743, 0
        %v772 = vsel %vm441, %v741, 0
        %774 = vmatprep.subr.mxu0 %v745
        %775 = vmatpush1.msra.mxu0 %v744
        %776 = vmatprep.subr.mxu0 %v748
        %777 = vmatpush1.msra.mxu0 %v747
        %778 = vmatprep.subr.mxu0 %v751
        %779 = vmatpush1.msra.mxu0 %v750
        %780 = vmatprep.subr.mxu0 %v754
        %781 = vmatpush1.msra.mxu0 %v753
        %782 = vmatprep.subr.mxu0 %v770
        %783 = vmatpush1.msra.mxu0 %v768
        %784 = vmatprep.subr.mxu0 0.0
        %785 = vmatpush1.msra.mxu0 0.0
        %786 = vmatprep.subr.mxu0 0.0
        %787 = vmatpush1.msra.mxu0 0.0
        %788 = vmatprep.subr.mxu0 0.0
        %789 = vmatpush1.msra.mxu0 0.0
        %790 = vmatprep.subr.mxu0 0.0
        %791 = vmatpush1.msra.mxu0 0.0
        %792 = vmatprep.subr.mxu0 0.0
        %793 = vmatpush1.msra.mxu0 0.0
        %794 = vmatprep.subr.mxu0 0.0
        %795 = vmatpush1.msra.mxu0 0.0
        %796 = vmatprep.subr.mxu0 0.0
        %797 = vmatpush1.msra.mxu0 0.0
        %798 = vmatprep.subr.mxu0 0.0
        %799 = vmatpush1.msra.mxu0 0.0
        %800 = vmatprep.subr.mxu0 0.0
        %801 = vmatpush1.msra.mxu0 0.0
        %802 = vmatprep.subr.mxu0 0.0
        %803 = vmatpush1.msra.mxu0 0.0
        %804 = vmatprep.subr.mxu0 0.0
        %805 = vmatpush1.msra.mxu0 0.0
        %806 = vmatprep.subr.mxu0 0.0
        %807 = vmatpush1.msra.mxu0 0.0
        %808 = vmatprep.subr.mxu0 0.0
        %809 = vmatpush1.msra.mxu0 0.0
        %810 = vmatprep.subr.mxu0 0.0
        %811 = vmatpush1.msra.mxu0 0.0
        %812 = vmatprep.subr.mxu0 0.0
        %813 = vmatpush1.msra.mxu0 0.0
        %814 = vmatprep.subr.mxu0 0.0
        %815 = vmatpush1.msra.mxu0 0.0
        %816 = vmatprep.subr.mxu0 0.0
        %817 = vmatpush1.msra.mxu0 0.0
        %818 = vmatprep.subr.mxu0 0.0
        %819 = vmatpush1.msra.mxu0 0.0
        %820 = vmatprep.subr.mxu0 0.0
        %821 = vmatpush1.msra.mxu0 0.0
        %822 = vmatprep.subr.mxu0 0.0
        %823 = vmatpush1.msra.mxu0 0.0
        %824 = vmatprep.subr.mxu0 0.0
        %825 = vmatpush1.msra.mxu0 0.0
        %826 = vmatprep.subr.mxu0 0.0
        %827 = vmatpush1.msra.mxu0 0.0
        %828 = vmatprep.subr.mxu0 0.0
        %829 = vmatpush1.msra.mxu0 0.0
        %830 = vmatprep.subr.mxu0 0.0
        %831 = vmatpush1.msra.mxu0 0.0
        %832 = vmatprep.subr.mxu0 0.0
        %833 = vmatpush1.msra.mxu0 0.0
        %834 = vmatprep.subr.mxu0 0.0
        %835 = vmatpush1.msra.mxu0 0.0
        %836 = vmatprep.subr.mxu0 0.0
        %837 = vmatpush1.msra.mxu0 0.0
        %838 = vmatprep.mubr.f32.mxu0 0.0
        %839 = vmatmul.mubr.f32.gmra.mrb[0].mxu0 %v766
        %v840 = vpop.f32.mrb[0].mxu0
        %v841 = vadd.f32 %v763, %v840
        %v842 = vpop.f32.mrb[0].mxu0
        %v843 = vadd.f32 %v763, %v842
        %844 = vdwg.mxu0
        %845 = vmatprep.subr.mxu0 0.0
        %846 = vmatpush1.msra.mxu0 %v746
        %847 = vmatprep.subr.mxu0 0.0
        %848 = vmatpush1.msra.mxu0 %v749
        %849 = vmatprep.subr.mxu0 0.0
        %850 = vmatpush1.msra.mxu0 %v752
        %851 = vmatprep.subr.mxu0 0.0
        %852 = vmatpush1.msra.mxu0 %v755
        %853 = vmatprep.subr.mxu0 0.0
        %854 = vmatpush1.msra.mxu0 %v772
        %855 = vmatprep.subr.mxu0 0.0
        %856 = vmatpush1.msra.mxu0 0.0
        %857 = vmatprep.subr.mxu0 0.0
        %858 = vmatpush1.msra.mxu0 0.0
        %859 = vmatprep.subr.mxu0 0.0
        %860 = vmatpush1.msra.mxu0 0.0
        %861 = vmatprep.subr.mxu0 0.0
        %862 = vmatpush1.msra.mxu0 0.0
        %863 = vmatprep.subr.mxu0 0.0
        %864 = vmatpush1.msra.mxu0 0.0
        %865 = vmatprep.subr.mxu0 0.0
        %866 = vmatpush1.msra.mxu0 0.0
        %867 = vmatprep.subr.mxu0 0.0
        %868 = vmatpush1.msra.mxu0 0.0
        %869 = vmatprep.subr.mxu0 0.0
        %870 = vmatpush1.msra.mxu0 0.0
        %871 = vmatprep.subr.mxu0 0.0
        %872 = vmatpush1.msra.mxu0 0.0
        %873 = vmatprep.subr.mxu0 0.0
        %874 = vmatpush1.msra.mxu0 0.0
        %875 = vmatprep.subr.mxu0 0.0
        %876 = vmatpush1.msra.mxu0 0.0
        %877 = vmatprep.subr.mxu0 0.0
        %878 = vmatpush1.msra.mxu0 0.0
        %879 = vmatprep.subr.mxu0 0.0
        %880 = vmatpush1.msra.mxu0 0.0
        %881 = vmatprep.subr.mxu0 0.0
        %882 = vmatpush1.msra.mxu0 0.0
        %883 = vmatprep.subr.mxu0 0.0
        %884 = vmatpush1.msra.mxu0 0.0
        %885 = vmatprep.subr.mxu0 0.0
        %886 = vmatpush1.msra.mxu0 0.0
        %887 = vmatprep.subr.mxu0 0.0
        %888 = vmatpush1.msra.mxu0 0.0
        %889 = vmatprep.subr.mxu0 0.0
        %890 = vmatpush1.msra.mxu0 0.0
        %891 = vmatprep.subr.mxu0 0.0
        %892 = vmatpush1.msra.mxu0 0.0
        %893 = vmatprep.subr.mxu0 0.0
        %894 = vmatpush1.msra.mxu0 0.0
        %895 = vmatprep.subr.mxu0 0.0
        %896 = vmatpush1.msra.mxu0 0.0
        %897 = vmatprep.subr.mxu0 0.0
        %898 = vmatpush1.msra.mxu0 0.0
        %899 = vmatprep.subr.mxu0 0.0
        %900 = vmatpush1.msra.mxu0 0.0
        %901 = vmatprep.subr.mxu0 0.0
        %902 = vmatpush1.msra.mxu0 0.0
        %903 = vmatprep.subr.mxu0 0.0
        %904 = vmatpush1.msra.mxu0 0.0
        %905 = vmatprep.subr.mxu0 0.0
        %906 = vmatpush1.msra.mxu0 0.0
        %907 = vmatprep.subr.mxu0 0.0
        %908 = vmatpush1.msra.mxu0 0.0
        %909 = vmatprep.mubr.f32.mxu0 0.0
        %910 = vmatmul.mubr.f32.gmra.mrb[0].mxu0 %v766
        %v911 = vpop.f32.mrb[0].mxu0
        %v912 = vadd.f32 %v763, %v911
        %v913 = vpop.f32.mrb[0].mxu0
        %914 = vdwg.mxu0
        %v915 = vxor.u32 %v841, 2147483648
        %v916 = vxor.u32 %v843, 2147483648
        %v917 = vxor.u32 %v912, 2147483648
        %v918 = vmul.f32 %v915, 1.442695
        %v919 = vpow.pop %v918
        %v920 = vmul.f32 %v916, 1.442695
        %v921 = vpow.pop %v920
        %v922 = vmul.f32 %v917, 1.442695
        %v923 = vpow.pop %v922
        %v924 = vadd.f32 %v919, 1.0
        %v925 = vadd.f32 %v921, 1.0
        %v926 = vadd.f32 %v923, 1.0
        %v927 = vrcp.pop %v924
        %v928 = vmul.f32 1.0, %v927
        %v929 = vrcp.pop %v925
        %v930 = vmul.f32 1.0, %v929
        %v931 = vrcp.pop %v926
        %v932 = vmul.f32 1.0, %v931
        %v935 = vcombine.low %v928, %v930
        %937 = vst [vmem:[%s213] sm:$0xff] %v935
        %vm938 = vcmask 257024
        %939 = vst.msk [vmem:[%s213 + $0x8] sm:$0xf] %vm938, %v932
        %s940 = sand.u32 %s118, 1
        %s941 = scalar_lea.sflag [#allocation5], %s940
        %s942 = sand.u32 %s118, 1
        %s943 = smul.addr %s942, 12
        %s944 = scalar_lea.vmem [#allocation6], %s943
        // Predicated region
        $region41: #{tpu_custom_call.1} parent=35 // pred_check
          %p945 = pneg %p128
        $region42: #{tpu_custom_call.1} parent=35 // pred_check_branch
          %947 = sbr.rel (%p945) target = $region44
        $region43: #{tpu_custom_call.1} parent=35 // pred_region
          %s949 = ssub.s32 192, 192
          %950 = vsyncadd %s941, %s949
          %s951 = smul.addr %s21, 3
          %s952 = smul.addr %s951, 64
          %s953 = scalar_lea.hbm %s4, %s952
          %s955 = sshll.u32 %s944, 4
          %s956 = int_to_ptr.vmem [resolvable:$true] %s955
          %958 = dma.vmem_to_hbm [thread:$0]  %s956, 192, %s953, %s941
        $region44: #{tpu_custom_call.1} parent=35 // pred_fallthru
          _
      $region36: #{tpu_custom_call.1} parent=5 // pred_fallthru
        _
      %p959 = scmp.le.s32.totalorder 2, %s16
      // Predicated region
      $region45: #{tpu_custom_call.1} parent=5 // pred_check
        %p960 = pneg %p959
      $region46: #{tpu_custom_call.1} parent=5 // pred_check_branch
        %962 = sbr.rel (%p960) target = $region48
      $region47: #{tpu_custom_call.1} parent=5 // pred_region
        %s963 = ssub.s32 %s16, 2
        // Predicated region
        $region49: #{tpu_custom_call.1} parent=47 // pred_check
          %p964 = pneg %p134
        $region50: #{tpu_custom_call.1} parent=47 // pred_check_branch
          %966 = sbr.rel (%p964) target = $region52
        $region51: #{tpu_custom_call.1} parent=47 // pred_region
          %s967 = sand.u32 %s119, 1
          %s968 = scalar_lea.sflag [#allocation5], %s967
          %s969 = sand.u32 %s119, 1
          %s970 = smul.addr %s969, 12
          %s971 = scalar_lea.vmem [#allocation6], %s970
          %972 = dma.done %s968, 192
        $region52: #{tpu_custom_call.1} parent=47 // pred_fallthru
          _
      $region48: #{tpu_custom_call.1} parent=5 // pred_fallthru
        _
    $region6: #{tpu_custom_call.1} parent=1 // loop_footer
      %s20 = sadd.s32 1, %s16
    $region7: #{tpu_custom_call.1} parent=1 // loop_footer_branch
      %15 = sbr.rel target = $region3
    $region8: #{tpu_custom_call.1} parent=1 // loop_exit
      _
    %973 = vsyncpa [#allocation4], 1
    %s974 = scalar_lea.sflag [#allocation4], 1
    %975 = vsyncpa %s974, 1
    %976 = vsyncpa [#allocation5], 1
    %s977 = scalar_lea.sflag [#allocation5], 1
    %978 = vsyncpa %s977, 1

</llo_original>
